<compile_context>
chip_gen: v7x
topology: tpu7x:2x2x1
jax: 0.10.0
libtpu: 0.0.40
codegen_flags: <defaults>
</compile_context>

<pallas_src>
import functools

import jax
import jax.numpy as jnp
from jax.experimental import pallas as pl
from jax.experimental.pallas import tpu as pltpu

_SQRT_2_OVER_PI = 0.7978845608028654          # sqrt(2 / pi)
_GELU_COEFF = 0.044715
_C2 = _SQRT_2_OVER_PI * _GELU_COEFF           # folded constant for Horner form
_LANES = 128


def _cdiv(a, b):
    return -(-a // b)


def _round_up(a, m):
    return ((a + m - 1) // m) * m


@functools.lru_cache(maxsize=1)
def _tpu_config():
    """(vmem_capacity_bytes, num_tensorcores, bf16_math_ok) with conservative fallbacks."""
    vmem_cap = 64 << 20      # conservative default: v7x per-TC VMEM
    n_tc = 1
    bf16_math = False
    try:
        vmem_cap = int(pltpu.get_tpu_info().vmem_capacity_bytes)
    except Exception:
        pass
    try:
        kind = jax.devices()[0].device_kind.lower()
        if "v7" in kind:
            n_tc = 2                       # 2 TensorCores per chip on v7x
        if ("v6" in kind) or ("v7" in kind):
            bf16_math = True               # native bf16 VALU/EUP
    except Exception:
        pass
    return vmem_cap, n_tc, bf16_math


def _make_gelu_kernel(compute_dtype):
    def kernel(x_ref, o_ref):
        x = x_ref[...].astype(compute_dtype)
        # Horner form of sqrt(2/pi) * (x + 0.044715 * x^3); tanh goes to the EUP slot.
        inner = x * (_SQRT_2_OVER_PI + _C2 * (x * x))
        y = 0.5 * x * (1.0 + jnp.tanh(inner))
        o_ref[...] = y.astype(o_ref.dtype)
    return kernel


def _pick_tiles(rows, cols, elem_bytes, n_tc, target_block_bytes):
    """Pick (row_tile, col_tile): biggest blocks that fit the target, megacore-aware."""
    # Column tile: full width unless a single 8-row slab would overflow the target
    # (only for a pathologically wide last dim).
    if cols <= _LANES or cols * elem_bytes * 8 <= target_block_bytes:
        col_tile = cols
    else:
        col_tile = max(_LANES,
                       (target_block_bytes // (8 * elem_bytes)) // _LANES * _LANES)

    # Row tile: as many rows as fit the target block (multiple of 8, or all rows).
    row_cap = max(1, target_block_bytes // (col_tile * elem_bytes))
    row_cap = max(8, (row_cap // 8) * 8)

    # v7x megacore: once the tensor is big enough to be worth splitting, keep the row
    # grid >= n_tc steps (and an even multiple of n_tc) so neither TC idles on a tail.
    total_bytes = rows * cols * elem_bytes
    if n_tc > 1 and total_bytes > (2 << 20):
        row_cap = min(row_cap, _round_up(_cdiv(rows, n_tc), 8))

    if rows <= row_cap:
        return rows, col_tile              # single full-height block

    row_tile = row_cap
    if n_tc > 1:
        steps = _cdiv(rows, row_tile)
        if steps % n_tc != 0:
            steps = _round_up(steps, n_tc)
            row_tile = max(8, _round_up(_cdiv(rows, steps), 8))
    return row_tile, col_tile


def gelu(x):
    """Elementwise tanh-GELU over an arbitrarily shaped array via a tiled Pallas kernel."""
    orig_shape = x.shape
    n = x.size
    if n == 0:
        return x

    elem_bytes = jnp.dtype(x.dtype).itemsize
    vmem_cap, n_tc, bf16_math = _tpu_config()
    target_block_bytes = min(16 << 20, max(4 << 20, vmem_cap // 8))

    # Copy-free 2-D lane view (reshape of a contiguous array = free).
    if n % _LANES == 0:
        cols = _LANES                      # fully lane-dense: unmasked vld/vst
    elif x.ndim >= 2:
        cols = orig_shape[-1]              # ragged total: keep native last dim, no padding
    else:
        cols = n                           # 1-D ragged: single row
    rows = n // cols
    x2 = x.reshape(rows, cols)

    row_tile, col_tile = _pick_tiles(rows, cols, elem_bytes, n_tc, target_block_bytes)
    grid = (_cdiv(rows, row_tile), _cdiv(cols, col_tile))

    # VMEM budget from the actual footprint: 2x double-buffered (in + out) blocks + margin.
    block_bytes = row_tile * col_tile * elem_bytes
    vmem_limit = int(min(vmem_cap, max(16 << 20, 4 * block_bytes + (8 << 20))))

    # bf16 math only where the VPU/EUP are natively bf16 (v6e/v7x); otherwise f32.
    compute_dtype = x.dtype if (bf16_math and x.dtype == jnp.bfloat16) else jnp.float32

    out = pl.pallas_call(
        _make_gelu_kernel(compute_dtype),
        out_shape=jax.ShapeDtypeStruct((rows, cols), x.dtype),
        grid_spec=pltpu.PrefetchScalarGridSpec(
            num_scalar_prefetch=0,
            grid=grid,
            in_specs=[pl.BlockSpec((row_tile, col_tile), lambda i, j: (i, j))],
            out_specs=pl.BlockSpec((row_tile, col_tile), lambda i, j: (i, j)),
        ),
        compiler_params=pltpu.CompilerParams(
            dimension_semantics=("parallel", "parallel"),
            vmem_limit_bytes=vmem_limit,
        ),
    )(x2)

    return out.reshape(orig_shape)


def _gelu_ref(x):
    xf = x.astype(jnp.float32)
    y = 0.5 * xf * (1.0 + jnp.tanh(_SQRT_2_OVER_PI * (xf + _GELU_COEFF * xf ** 3)))
    return y.astype(x.dtype)


if __name__ == "__main__":
    key = jax.random.PRNGKey(0)
    k1, k2, k3, k4 = jax.random.split(key, 4)

    # Shapes consistent with the GPT module's GELU (batch=2, seq=8, hidden sizes).
    x1 = jax.random.normal(k1, (2, 8, 64), dtype=jnp.float32)    # lane-aligned (rows=8)
    x2 = jax.random.normal(k2, (2, 8, 32), dtype=jnp.float32)    # tiny, single block
    x3 = jax.random.normal(k3, (4, 128, 256), dtype=jnp.float32) # larger, still one block
    x4 = jax.random.normal(k4, (2, 8, 50), dtype=jnp.float32)    # ragged total (no padding path)

    for x in (x1, x2, x3, x4):
        y = gelu(x)
        jax.block_until_ready(y)
        ref = _gelu_ref(x)
        assert y.shape == x.shape and y.dtype == x.dtype
        assert jnp.allclose(y, ref, atol=1e-5, rtol=1e-5), "mismatch vs reference"

    print("KERNEL_OK")
</pallas_src>

<mosaic_0001>
module attributes {stable_mosaic.version = 11 : i64} {
  func.func @kernel(%arg0: i32, %arg1: i32, %arg2: memref<8x128xf32, #tpu.memory_space<vmem>>, %arg3: memref<8x128xf32, #tpu.memory_space<vmem>>) attributes {dimension_semantics = [#tpu.dimension_semantics<parallel>, #tpu.dimension_semantics<parallel>], iteration_bounds = array<i64: 1, 1>, scalar_prefetch = 0 : i64, scratch_operands = 0 : i64, tpu.core_type = #tpu.core_type<tc>, window_params = [{transform_indices = @transform_0, window_bounds = array<i64: 8, 128>}, {transform_indices = @transform_1, window_bounds = array<i64: 8, 128>}]} {
    %c0 = arith.constant 0 : index
    %c0_0 = arith.constant 0 : index
    %0 = vector.load %arg2[%c0, %c0_0] : memref<8x128xf32, #tpu.memory_space<vmem>>, vector<8x128xf32>
    %1 = arith.mulf %0, %0 : vector<8x128xf32>
    %cst = arith.constant 0.0356774069 : f32
    %2 = vector.broadcast %cst : f32 to vector<8x128xf32>
    %3 = arith.mulf %2, %1 : vector<8x128xf32>
    %cst_1 = arith.constant 0.797884583 : f32
    %4 = vector.broadcast %cst_1 : f32 to vector<8x128xf32>
    %5 = arith.addf %4, %3 : vector<8x128xf32>
    %6 = arith.mulf %0, %5 : vector<8x128xf32>
    %cst_2 = arith.constant 5.000000e-01 : f32
    %7 = vector.broadcast %cst_2 : f32 to vector<8x128xf32>
    %8 = arith.mulf %7, %0 : vector<8x128xf32>
    %9 = math.tanh %6 : vector<8x128xf32>
    %cst_3 = arith.constant 1.000000e+00 : f32
    %10 = vector.broadcast %cst_3 : f32 to vector<8x128xf32>
    %11 = arith.addf %10, %9 : vector<8x128xf32>
    %12 = arith.mulf %8, %11 : vector<8x128xf32>
    %c0_4 = arith.constant 0 : index
    %c0_5 = arith.constant 0 : index
    %13 = vector.load %arg3[%c0_4, %c0_5] : memref<8x128xf32, #tpu.memory_space<vmem>>, vector<8x128xf32>
    tpu.vector_store %arg3[%c0_4, %c0_5], %12 {strides = array<i32>} : memref<8x128xf32, #tpu.memory_space<vmem>>, vector<8x128xf32>,
    return
  }
  func.func @transform_0(%arg0: i32, %arg1: i32) -> (i32, i32) {
    %c0_i32 = arith.constant 0 : i32
    return %arg0, %arg1 : i32, i32
  }
  func.func @transform_1(%arg0: i32, %arg1: i32) -> (i32, i32) {
    %c0_i32 = arith.constant 0 : i32
    return %arg0, %arg1 : i32, i32
  }
}

</mosaic_0001>

<llo_original>
// kernel: tpu_custom_call.1
$region0: #{tpu_custom_call.1}
  #allocation0 [shape = 'u32[]', space=smem, size = 0x4, offset = 0x4, fixed_abs, tag = 'smem constant byte address 0x4 - core index']
  #allocation1 [shape = 'u32[144,128]{1,0:T(1,128)}', space=vmem, size = 0x12000, scoped, tag = 'internal scratch']
  %s0 = inlined_call_operand.hbm [shape: f32[8,128], index: 0, kind: input, shape index: {}]
  %s1 = inlined_call_operand.hbm [shape: f32[8,128], index: 1, kind: output, shape index: {}]
  %s2 = sld [smem:[#allocation0]]
  $region18: #{tpu_custom_call.1} parent=0
    _
  %s4 = ssub.s32 1, %s2
  %s5 = scalar_select 0, %s4, %s2
  $region1: #{tpu_custom_call.1} parent=0
    #allocation2 [shape = 'u8[4096]{0}', space=vmem, size = 0x1000, scoped, tag = 'input window, operand 0, single buffered']
    #allocation3 [shape = 's32[1]{0}', space=sflag, size = 0x4, scoped, tag = 'scoped memory for tpu_custom_call.1']
    #allocation4 [shape = 's32[1]{0}', space=sflag, size = 0x4, scoped, tag = 'scoped memory for tpu_custom_call.1']
    #allocation5 [shape = 'u8[4096]{0}', space=vmem, size = 0x1000, scoped, tag = 'output window, operand 0, single buffered']
    %6 = vsyncpa [#allocation3], 0
    %7 = vsyncpa [#allocation4], 0
    // Predicated region
    $region2: #{tpu_custom_call.1} parent=1 // pred_check
      _
    $region3: #{tpu_custom_call.1} parent=1 // pred_check_branch
      %9 = sbr.rel (0) target = $region5
    $region4: #{tpu_custom_call.1} parent=1 // pred_region
      %s11 = ssub.s32 128, 128
      %12 = vsyncadd [#allocation3], %s11
      %s14 = sshll.u32 [#allocation2], 4
      %s15 = int_to_ptr.vmem [resolvable:$true] %s14
      %17 = dma.hbm_to_vmem [thread:$0]  %s0, 128, %s15, [#allocation3]
    $region5: #{tpu_custom_call.1} parent=1 // pred_fallthru
      _
    // Predicated region
    $region6: #{tpu_custom_call.1} parent=1 // pred_check
      _
    $region7: #{tpu_custom_call.1} parent=1 // pred_check_branch
      %19 = sbr.rel (0) target = $region9
    $region8: #{tpu_custom_call.1} parent=1 // pred_region
      %20 = dma.done [#allocation3], 128
    $region9: #{tpu_custom_call.1} parent=1 // pred_fallthru
      _
    %v21 = vld [vmem:[#allocation2] sm:$0xff]
    %v22 = vmul.f32 %v21, %v21
    %v23 = vmul.f32 %v22, 0.035677407
    %v24 = vadd.f32 %v23, 0.7978846
    %v25 = vmul.f32 %v21, %v24
    %v26 = vmul.f32 %v21, 0.5
    %v27 = vtanh.pop %v25
    %v28 = vadd.f32 %v27, 1.0
    %v29 = vmul.f32 %v26, %v28
    %30 = vst [vmem:[#allocation5] sm:$0xff] %v29
    // Predicated region
    $region10: #{tpu_custom_call.1} parent=1 // pred_check
      _
    $region11: #{tpu_custom_call.1} parent=1 // pred_check_branch
      %32 = sbr.rel (0) target = $region13
    $region12: #{tpu_custom_call.1} parent=1 // pred_region
      %s34 = ssub.s32 128, 128
      %35 = vsyncadd [#allocation4], %s34
      %s37 = sshll.u32 [#allocation5], 4
      %s38 = int_to_ptr.vmem [resolvable:$true] %s37
      %40 = dma.vmem_to_hbm [thread:$0]  %s38, 128, %s1, [#allocation4]
    $region13: #{tpu_custom_call.1} parent=1 // pred_fallthru
      _
    // Predicated region
    $region14: #{tpu_custom_call.1} parent=1 // pred_check
      _
    $region15: #{tpu_custom_call.1} parent=1 // pred_check_branch
      %42 = sbr.rel (0) target = $region17
    $region16: #{tpu_custom_call.1} parent=1 // pred_region
      %43 = dma.done [#allocation4], 128
    $region17: #{tpu_custom_call.1} parent=1 // pred_fallthru
      _
    %44 = vsyncpa [#allocation3], 1
    %45 = vsyncpa [#allocation4], 1

</llo_original>
